<compile_context>
chip_gen: v5e
topology: v5e:2x2
jax: 0.10.0
libtpu: 0.0.40
codegen_flags: <defaults>
</compile_context>

<pallas_src>
import math

import jax
import jax.numpy as jnp
from jax.experimental import pallas as pl
from jax.experimental.pallas import tpu as pltpu


_INV_SQRT_2PI = 1.0 / math.sqrt(2.0 * math.pi)


def _round_up(x: int, m: int) -> int:
    return ((x + m - 1) // m) * m


def _udm_components_kernel(classes_ref, params_ref, comps_ref):
    """One (RT, Kp) slab of Normal-kernel components per grid step.

    classes_ref : (1, Kp)  f32  shared grain-size class grid (phi units),
                                constant index_map -> effectively resident.
    params_ref  : (RT, 3)  f32  per-row [loc, c2, logc] (precomputed in the
                                wrapper; no softplus / divide / log in-kernel).
    comps_ref   : (RT, Kp)      exp((x - loc)^2 * c2 + logc)
    """
    x = classes_ref[...]                       # (1, Kp)
    loc = params_ref[:, 0:1]                   # (RT, 1)
    c2 = params_ref[:, 1:2]                    # (RT, 1)
    logc = params_ref[:, 2:3]                  # (RT, 1)
    d = x - loc                                # (RT, Kp)  sub
    comps_ref[...] = jnp.exp(d * d * c2 + logc).astype(comps_ref.dtype)
    #                 ^ mul, mul, add + one EUP exp -> 4 VALU ops/elem


def udm_forward(classes_phi_1d, comp_params, prop_params, interval_phi,
                *, row_tile=4096, out_dtype=jnp.float32):
    """Forward pass of UDMModule (Normal kernel).

    classes_phi_1d : (K,)      shared grain-size classes in phi units
    comp_params    : (S, C, 2) raw [loc, scale] per sample/component
    prop_params    : (S, 1, C) raw proportion logits
    Returns (proportions (S,1,C), components (S,C,K)).
    """
    S, C, two = comp_params.shape
    assert two == 2
    K = classes_phi_1d.shape[0]

    # ProportionModule: trivial C-wide softmax stays in plain JAX (keeping it
    # in the Pallas loop would force masked lane-width-C stores).
    proportions = jax.nn.softmax(prop_params.astype(jnp.float32), axis=-1)

    # ---- Hoist per-row transcendentals out of the kernel (tiny arrays) ----
    rows = S * C
    raw = comp_params.reshape(rows, 2).astype(jnp.float32)
    loc = raw[:, 0]
    scale = jax.nn.softplus(raw[:, 1])                       # > 0
    c2 = -0.5 / (scale * scale)
    logc = jnp.log(interval_phi * _INV_SQRT_2PI) - jnp.log(scale)
    params3 = jnp.stack([loc, c2, logc], axis=-1)            # (rows, 3)

    # ---- Lane-dense class grid: pad K up to a multiple of 128 -------------
    Kp = _round_up(K, 128)
    classes_2d = classes_phi_1d.astype(jnp.float32).reshape(1, K)
    if Kp != K:
        classes_2d = jnp.pad(classes_2d, ((0, 0), (0, Kp - K)))

    # ---- Row tiling: >=2 blocks (v7x 2-TC split) + large tiles ------------
    rows8 = _round_up(rows, 8)
    rt = min(int(row_tile), rows8)
    if rows8 >= 16:
        rt = min(rt, _round_up(pl.cdiv(rows8, 2), 8))
    rt = max(_round_up(rt, 8), 8)
    grid = (pl.cdiv(rows, rt),)

    # Pad the (tiny) params array so every grid step reads in-bounds; the
    # output keeps the exact row count and the ragged last block is clipped
    # on writeback (no post-kernel row-slice copy of the big array).
    rows_padded = grid[0] * rt
    if rows_padded != rows:
        params3 = jnp.pad(params3, ((0, rows_padded - rows), (0, 0)))

    cost = pl.CostEstimate(
        flops=int(4 * rows * Kp),
        transcendentals=int(rows * Kp),
        bytes_accessed=int(rows * Kp * jnp.dtype(out_dtype).itemsize
                           + rows_padded * 3 * 4 + Kp * 4),
    )

    comps = pl.pallas_call(
        _udm_components_kernel,
        out_shape=jax.ShapeDtypeStruct((rows, Kp), out_dtype),
        grid=grid,
        in_specs=[
            pl.BlockSpec((1, Kp), lambda i: (0, 0)),    # shared class grid
            pl.BlockSpec((rt, 3), lambda i: (i, 0)),    # per-row [loc, c2, logc]
        ],
        out_specs=pl.BlockSpec((rt, Kp), lambda i: (i, 0)),
        compiler_params=pltpu.CompilerParams(
            dimension_semantics=("parallel",)),
        cost_estimate=cost,
    )(classes_2d, params3)

    if Kp != K:
        comps = comps[:, :K]        # only when n_classes isn't a 128 multiple
    components = comps.reshape(S, C, K)
    return proportions, components


def _reference(classes_phi_1d, comp_params, prop_params, interval_phi):
    S, C, _ = comp_params.shape
    K = classes_phi_1d.shape[0]
    x = jnp.broadcast_to(classes_phi_1d[None, None, :], (S, C, K)).astype(jnp.float32)
    loc = comp_params[:, :, 0:1].astype(jnp.float32)
    scale = jax.nn.softplus(comp_params[:, :, 1:2].astype(jnp.float32))
    z = (x - loc) / scale
    comps = jnp.exp(-0.5 * z * z) / (scale * jnp.sqrt(2.0 * jnp.pi)) * interval_phi
    props = jax.nn.softmax(prop_params.astype(jnp.float32), axis=-1)
    return props, comps


if __name__ == "__main__":
    # Small shapes consistent with the module's __init__.
    n_samples, n_components, n_classes = 8, 3, 128

    # Fixed grain-size class grid in phi units (non-trainable param in torch).
    classes_phi_1d = jnp.linspace(0.0, 12.7, n_classes, dtype=jnp.float32)
    interval_phi = abs(float(classes_phi_1d[0]) - float(classes_phi_1d[-1])) / (n_classes - 1)

    key = jax.random.PRNGKey(0)
    k1, k2, k3, k4, k5, k6 = jax.random.split(key, 6)
    comp_params = jax.random.uniform(
        k1, (n_samples, n_components, 2), dtype=jnp.float32, minval=0.5, maxval=6.0)
    prop_params = jax.random.uniform(
        k2, (n_samples, 1, n_components), dtype=jnp.float32, minval=-1.0, maxval=1.0)

    props, comps = udm_forward(classes_phi_1d, comp_params, prop_params, interval_phi)
    jax.block_until_ready((props, comps))
    ref_props, ref_comps = _reference(classes_phi_1d, comp_params, prop_params, interval_phi)
    assert props.shape == (n_samples, 1, n_components)
    assert comps.shape == (n_samples, n_components, n_classes)
    assert jnp.allclose(props, ref_props, atol=1e-6, rtol=1e-5)
    assert jnp.allclose(comps, ref_comps, atol=1e-6, rtol=1e-4)

    # Multi-block + ragged-last-block path (grid > 1, megacore-parallel).
    S2 = 40
    comp_params2 = jax.random.uniform(
        k3, (S2, n_components, 2), dtype=jnp.float32, minval=0.5, maxval=6.0)
    prop_params2 = jax.random.uniform(
        k4, (S2, 1, n_components), dtype=jnp.float32, minval=-1.0, maxval=1.0)
    props2, comps2 = udm_forward(classes_phi_1d, comp_params2, prop_params2,
                                 interval_phi, row_tile=32)
    jax.block_until_ready((props2, comps2))
    ref_props2, ref_comps2 = _reference(classes_phi_1d, comp_params2,
                                        prop_params2, interval_phi)
    assert comps2.shape == (S2, n_components, n_classes)
    assert jnp.allclose(props2, ref_props2, atol=1e-6, rtol=1e-5)
    assert jnp.allclose(comps2, ref_comps2, atol=1e-6, rtol=1e-4)

    # Non-multiple-of-128 class grid (lane padding path).
    K3, S3 = 100, 5
    classes3 = jnp.linspace(0.0, 9.9, K3, dtype=jnp.float32)
    interval3 = abs(float(classes3[0]) - float(classes3[-1])) / (K3 - 1)
    comp_params3 = jax.random.uniform(
        k5, (S3, n_components, 2), dtype=jnp.float32, minval=0.5, maxval=6.0)
    prop_params3 = jax.random.uniform(
        k6, (S3, 1, n_components), dtype=jnp.float32, minval=-1.0, maxval=1.0)
    props3, comps3 = udm_forward(classes3, comp_params3, prop_params3, interval3)
    jax.block_until_ready((props3, comps3))
    ref_props3, ref_comps3 = _reference(classes3, comp_params3, prop_params3, interval3)
    assert comps3.shape == (S3, n_components, K3)
    assert jnp.allclose(props3, ref_props3, atol=1e-6, rtol=1e-5)
    assert jnp.allclose(comps3, ref_comps3, atol=1e-6, rtol=1e-4)

    print("KERNEL_OK")
</pallas_src>

<mosaic_0001>
module attributes {stable_mosaic.version = 11 : i64} {
  func.func @_udm_components_kernel(%arg0: i32, %arg1: memref<1x128xf32, #tpu.memory_space<vmem>>, %arg2: memref<16x3xf32, #tpu.memory_space<vmem>>, %arg3: memref<16x128xf32, #tpu.memory_space<vmem>>) attributes {dimension_semantics = [#tpu.dimension_semantics<parallel>], iteration_bounds = array<i64: 2>, scalar_prefetch = 0 : i64, scratch_operands = 0 : i64, tpu.core_type = #tpu.core_type<tc>, window_params = [{pipeline_mode = #tpu.pipeline_mode<synchronous>, transform_indices = @transform_0, window_bounds = array<i64: 1, 128>}, {transform_indices = @transform_1, window_bounds = array<i64: 16, 3>}, {transform_indices = @transform_2, window_bounds = array<i64: 16, 128>}]} {
    %c0 = arith.constant 0 : index
    %c0_0 = arith.constant 0 : index
    %0 = vector.load %arg1[%c0, %c0_0] : memref<1x128xf32, #tpu.memory_space<vmem>>, vector<1x128xf32>
    %c0_1 = arith.constant 0 : index
    %c0_2 = arith.constant 0 : index
    %1 = vector.load %arg2[%c0_1, %c0_2] : memref<16x3xf32, #tpu.memory_space<vmem>>, vector<16x1xf32>
    %c0_3 = arith.constant 0 : index
    %c1 = arith.constant 1 : index
    %2 = vector.load %arg2[%c0_3, %c1] : memref<16x3xf32, #tpu.memory_space<vmem>>, vector<16x1xf32>
    %c0_4 = arith.constant 0 : index
    %c2 = arith.constant 2 : index
    %3 = vector.load %arg2[%c0_4, %c2] : memref<16x3xf32, #tpu.memory_space<vmem>>, vector<16x1xf32>
    %4 = vector.broadcast %0 : vector<1x128xf32> to vector<16x128xf32>
    %5 = vector.broadcast %1 : vector<16x1xf32> to vector<16x128xf32>
    %6 = arith.subf %4, %5 : vector<16x128xf32>
    %7 = arith.mulf %6, %6 : vector<16x128xf32>
    %8 = vector.broadcast %2 : vector<16x1xf32> to vector<16x128xf32>
    %9 = arith.mulf %7, %8 : vector<16x128xf32>
    %10 = vector.broadcast %3 : vector<16x1xf32> to vector<16x128xf32>
    %11 = arith.addf %9, %10 : vector<16x128xf32>
    %12 = math.exp %11 : vector<16x128xf32>
    %c0_5 = arith.constant 0 : index
    %c0_6 = arith.constant 0 : index
    %13 = vector.load %arg3[%c0_5, %c0_6] : memref<16x128xf32, #tpu.memory_space<vmem>>, vector<16x128xf32>
    tpu.vector_store %arg3[%c0_5, %c0_6], %12 {strides = array<i32>} : memref<16x128xf32, #tpu.memory_space<vmem>>, vector<16x128xf32>,
    return
  }
  func.func @transform_0(%arg0: i32) -> (i32, i32) {
    %c0_i32 = arith.constant 0 : i32
    %c0_i32_0 = arith.constant 0 : i32
    %c0_i32_1 = arith.constant 0 : i32
    return %c0_i32, %c0_i32_0 : i32, i32
  }
  func.func @transform_1(%arg0: i32) -> (i32, i32) {
    %c0_i32 = arith.constant 0 : i32
    %c0_i32_0 = arith.constant 0 : i32
    return %arg0, %c0_i32 : i32, i32
  }
  func.func @transform_2(%arg0: i32) -> (i32, i32) {
    %c0_i32 = arith.constant 0 : i32
    %c0_i32_0 = arith.constant 0 : i32
    return %arg0, %c0_i32 : i32, i32
  }
}

</mosaic_0001>

<llo_original>
// kernel: tpu_custom_call.1
$region0: #{tpu_custom_call.1}
  #allocation0 [shape = 'u32[]', space=smem, size = 0x4, offset = 0x4, fixed_abs, tag = 'smem constant byte address 0x4 - core index']
  #allocation1 [shape = 'u32[72,128]{1,0:T(1,128)}', space=vmem, size = 0x9000, scoped, tag = 'internal scratch']
  %s0 = inlined_call_operand.vmem [shape: f32[1,128], index: 0, kind: input, shape index: {}]
  %s1 = inlined_call_operand.vmem [shape: f32[32,3], index: 1, kind: input, shape index: {}]
  %s2 = inlined_call_operand.hbm [shape: f32[24,128], index: 2, kind: output, shape index: {}]
  %s3 = sld [smem:[#allocation0]]
  $region41: #{tpu_custom_call.1} parent=0
    _
  %s5 = ssub.s32 1, %s3
  %s6 = scalar_select 0, %s5, %s3
  $region1: #{tpu_custom_call.1} parent=0
    #allocation2 [shape = 'u8[16384]{0}', space=vmem, size = 0x4000, scoped, tag = 'output window, operand 0']
    #allocation3 [shape = 's32[2]{0}', space=sflag, size = 0x8, scoped, tag = 'scoped memory for tpu_custom_call.1']
    %7 = vsyncpa [#allocation3], 0
    %s8 = scalar_lea.sflag [#allocation3], 1
    %9 = vsyncpa %s8, 0
    loop: start=0, step=1, limit=4
    $region2: #{tpu_custom_call.1} parent=1 // loop_pre_header
      _
    $region3: #{tpu_custom_call.1} parent=1 // loop_header
      %s11 = sphi 0, %s15
      %p12 = scmp.ge.s32.totalorder %s11, 4
      %s19 = sphi 0, %s19
      %s21 = sphi 0, %s19
      %s22 = sphi 0, %s21
      %s36 = sphi 0, %s22
      %s42 = sphi 0, %s44
      %s45 = sphi 0, %s42
      %s46 = sphi 0, %s45
      %s62 = sphi 0, %s46
      %s68 = sphi 0, %s70
      %s71 = sphi 0, %s68
      %s72 = sphi 0, %s71
      %s88 = sphi 0, %s72
    $region4: #{tpu_custom_call.1} parent=1 // loop_header_branch
      %14 = sbr.rel (%p12) target = $region8
    $region5: #{tpu_custom_call.1} parent=1 // loop_body
      %s16 = ssub.s32 %s11, 1
      %s17 = ssub.s32 %s11, 2
      %s18 = sadd.s32 %s11, 1
      %s20 = sadd.s32 %s19, 1
      %p23 = scmp.eq.s32.totalorder %s11, 1
      %p24 = scmp.ne.s32.totalorder %s19, %s21
      %p25 = scmp.eq.s32.totalorder %s11, 0
      %p26 = por %p24, %p25
      %p27 = scmp.ne.s32.totalorder %s19, %s21
      %p28 = scmp.eq.s32.totalorder %s16, 1
      %p29 = por %p27, %p28
      %p30 = scmp.ne.s32.totalorder %s21, %s22
      %p31 = scmp.eq.s32.totalorder %s16, 0
      %p32 = por %p30, %p31
      %p33 = scmp.ne.s32.totalorder %s21, %s22
      %p34 = scmp.eq.s32.totalorder %s17, 1
      %p35 = por %p33, %p34
      %p37 = scmp.ne.s32.totalorder %s22, %s36
      %p38 = scmp.eq.s32.totalorder %s17, 0
      %p39 = por %p37, %p38
      %s40 = ssub.s32 %s11, %s18
      %p41 = scmp.eq.s32.totalorder %s40, 0
      %s43 = sadd.s32 %s42, 1
      %s44 = scalar_select %p41, %s42, %s43
      %p47 = pneg %p41
      %p48 = scmp.eq.s32.totalorder %s11, 1
      %p49 = por %p47, %p48
      %p50 = scmp.ne.s32.totalorder %s42, %s45
      %p51 = scmp.eq.s32.totalorder %s11, 0
      %p52 = por %p50, %p51
      %p53 = scmp.ne.s32.totalorder %s42, %s45
      %p54 = scmp.eq.s32.totalorder %s16, 1
      %p55 = por %p53, %p54
      %p56 = scmp.ne.s32.totalorder %s45, %s46
      %p57 = scmp.eq.s32.totalorder %s16, 0
      %p58 = por %p56, %p57
      %p59 = scmp.ne.s32.totalorder %s45, %s46
      %p60 = scmp.eq.s32.totalorder %s17, 1
      %p61 = por %p59, %p60
      %p63 = scmp.ne.s32.totalorder %s46, %s62
      %p64 = scmp.eq.s32.totalorder %s17, 0
      %p65 = por %p63, %p64
      %s66 = ssub.s32 %s11, %s18
      %p67 = scmp.eq.s32.totalorder %s66, 0
      %s69 = sadd.s32 %s68, 1
      %s70 = scalar_select %p67, %s68, %s69
      %p73 = pneg %p67
      %p74 = scmp.eq.s32.totalorder %s11, 1
      %p75 = por %p73, %p74
      %p76 = scmp.ne.s32.totalorder %s68, %s71
      %p77 = scmp.eq.s32.totalorder %s11, 0
      %p78 = por %p76, %p77
      %p79 = scmp.ne.s32.totalorder %s68, %s71
      %p80 = scmp.eq.s32.totalorder %s16, 1
      %p81 = por %p79, %p80
      %p82 = scmp.ne.s32.totalorder %s71, %s72
      %p83 = scmp.eq.s32.totalorder %s16, 0
      %p84 = por %p82, %p83
      %p85 = scmp.ne.s32.totalorder %s71, %s72
      %p86 = scmp.eq.s32.totalorder %s17, 1
      %p87 = por %p85, %p86
      %p89 = scmp.ne.s32.totalorder %s72, %s88
      %p90 = scmp.eq.s32.totalorder %s17, 0
      %p91 = por %p89, %p90
      %p92 = scmp.le.s32.totalorder 1, %s11
      %p93 = scmp.lt.s32.totalorder %s11, 3
      %p94 = pnand %p92, %p93
      %p95 = pneg %p94
      // Predicated region
      $region9: #{tpu_custom_call.1} parent=5 // pred_check
        _
      $region10: #{tpu_custom_call.1} parent=5 // pred_check_branch
        %97 = sbr.rel (%p94) target = $region12
      $region11: #{tpu_custom_call.1} parent=5 // pred_region
        %s98 = ssub.s32 %s11, 1
        // Predicated region
        $region13: #{tpu_custom_call.1} parent=11 // pred_check
          %p99 = pneg %p32
        $region14: #{tpu_custom_call.1} parent=11 // pred_check_branch
          %101 = sbr.rel (%p99) target = $region16
        $region15: #{tpu_custom_call.1} parent=11 // pred_region
          _
        $region16: #{tpu_custom_call.1} parent=11 // pred_fallthru
          _
      $region12: #{tpu_custom_call.1} parent=5 // pred_fallthru
        _
      %p102 = scmp.lt.s32.totalorder %s11, 2
      // Predicated region
      $region17: #{tpu_custom_call.1} parent=5 // pred_check
        %p103 = pneg %p102
      $region18: #{tpu_custom_call.1} parent=5 // pred_check_branch
        %105 = sbr.rel (%p103) target = $region20
      $region19: #{tpu_custom_call.1} parent=5 // pred_region
        // Predicated region
        $region21: #{tpu_custom_call.1} parent=19 // pred_check
          %p106 = pneg %p52
        $region22: #{tpu_custom_call.1} parent=19 // pred_check_branch
          %108 = sbr.rel (%p106) target = $region24
        $region23: #{tpu_custom_call.1} parent=19 // pred_region
          %s109 = smul.u32 2, %s11
          %p110 = scmp.lt.s32.totalorder %s109, 3
          %s111 = scalar_select %p110, %s109, 3
          %s112 = smul.addr %s111, 8
          %s113 = scalar_lea.vmem %s1, %s112
          %s114 = smul.u32 2, %s11
        $region24: #{tpu_custom_call.1} parent=19 // pred_fallthru
          _
      $region20: #{tpu_custom_call.1} parent=5 // pred_fallthru
        _
      %p115 = scmp.le.s32.totalorder 1, %s11
      %p116 = scmp.lt.s32.totalorder %s11, 3
      %p117 = pnand %p115, %p116
      %p118 = pneg %p117
      // Predicated region
      $region25: #{tpu_custom_call.1} parent=5 // pred_check
        _
      $region26: #{tpu_custom_call.1} parent=5 // pred_check_branch
        %120 = sbr.rel (%p117) target = $region28
      $region27: #{tpu_custom_call.1} parent=5 // pred_region
        %s121 = ssub.s32 %s11, 1
        %p122 = pneg %p32
        %p123 = pneg %p29
        %s124 = smul.u32 2, %s16
        %p125 = scmp.lt.s32.totalorder %s124, 3
        %s126 = scalar_select %p125, %s124, 3
        %s127 = smul.addr %s126, 8
        %s128 = scalar_lea.vmem %s1, %s127
        %p129 = pneg %p58
        %p130 = pneg %p55
        %p131 = pneg %p84
        %p132 = pneg %p81
        %s133 = sand.u32 %s71, 1
        %s134 = scalar_lea.sflag [#allocation3], %s133
        %s135 = sand.u32 %s71, 1
        %s136 = smul.addr %s135, 16
        %s137 = scalar_lea.vmem [#allocation2], %s136
        %s138 = smul.u32 2, %s16
        %p139 = scmp.lt.s32.totalorder %s138, 3
        %s140 = scalar_select %p139, %s138, 3
        %s141 = smul.addr %s140, 8
        %s142 = scalar_lea.vmem %s1, %s141
        %s143 = smul.u32 2, %s16
        %s144 = smul.u32 2, %s16
        %s145 = ssub.s32 3, %s144
        %p146 = scmp.lt.s32.totalorder %s145, 2
        %s147 = scalar_select %p146, %s145, 2
        %s148 = smul.u32 8, %s147
        %v149 = vld [vmem:[%s0] sm:$0x1]
        %v150 = vld [vmem:[%s142] sm:$0xff]
        %v151 = vld [vmem:[%s142 + $0x8] sm:$0xff]
        %v153 = vperm.slane %v149, 0
        %156 = vset.pattern.permute.xlu0 0
        %157 = vperm.xlu0 %156, %v150
        %v158 = vpop.permute.xlu0 %157
        %161 = vset.pattern.permute.xlu0 0
        %162 = vperm.xlu0 %161, %v151
        %v163 = vpop.permute.xlu0 %162
        %v165 = vsub.f32 %v153, %v158
        %v166 = vsub.f32 %v153, %v163
        %v167 = vmul.f32 %v165, %v165
        %v168 = vmul.f32 %v166, %v166
        %169 = vset.pattern.permute.xlu0 1
        %170 = vperm.xlu0 %169, %v150
        %v171 = vpop.permute.xlu0 %170
        %173 = vset.pattern.permute.xlu0 1
        %174 = vperm.xlu0 %173, %v151
        %v175 = vpop.permute.xlu0 %174
        %v177 = vmul.f32 %v167, %v171
        %v178 = vmul.f32 %v168, %v175
        %179 = vset.pattern.permute.xlu0 2
        %180 = vperm.xlu0 %179, %v150
        %v181 = vpop.permute.xlu0 %180
        %183 = vset.pattern.permute.xlu0 2
        %184 = vperm.xlu0 %183, %v151
        %v185 = vpop.permute.xlu0 %184
        %v187 = vadd.f32 %v177, %v181
        %v188 = vadd.f32 %v178, %v185
        %v189 = vmul.f32 %v187, 1.442695
        %v190 = vpow.pop %v189
        %v191 = vmul.f32 %v188, 1.442695
        %v192 = vpow.pop %v191
        %193 = vst [vmem:[%s137] sm:$0xff] %v190
        %194 = vst [vmem:[%s137 + $0x8] sm:$0xff] %v192
        %s195 = sand.u32 %s71, 1
        %s196 = scalar_lea.sflag [#allocation3], %s195
        %s197 = sand.u32 %s71, 1
        %s198 = smul.addr %s197, 16
        %s199 = scalar_lea.vmem [#allocation2], %s198
        // Predicated region
        $region29: #{tpu_custom_call.1} parent=27 // pred_check
          %p200 = pneg %p81
        $region30: #{tpu_custom_call.1} parent=27 // pred_check_branch
          %202 = sbr.rel (%p200) target = $region32
        $region31: #{tpu_custom_call.1} parent=27 // pred_region
          %s203 = smul.u32 2, %s16
          %s204 = ssub.s32 3, %s203
          %p205 = scmp.lt.s32.totalorder %s204, 2
          %s206 = scalar_select %p205, %s204, 2
          %s207 = smul.u32 8, %s206
          %s208 = ssub.s32 16, %s207
          %s209 = sshll.u32 %s208, 4
          %210 = vsyncadd %s196, %s209
          %p211 = scmp.ne.s32.totalorder 0, %s207
          %s212 = smul.addr %s203, 8
          %s213 = scalar_lea.hbm %s2, %s212
          %s214 = smul.u32 8, %s206
          %s215 = sshll.u32 %s199, 4
          %s216 = int_to_ptr.vmem [resolvable:$true] %s215
          %s217 = sshll.u32 %s213, 4
          %s218 = int_to_ptr.hbm [resolvable:$true] %s217
          %s219 = sshll.u32 %s214, 4
          %223 = dma.vmem_to_hbm [thread:$0]  (%p211), %s216, %s219, %s218, %s196, 128, 128, 8
        $region32: #{tpu_custom_call.1} parent=27 // pred_fallthru
          _
      $region28: #{tpu_custom_call.1} parent=5 // pred_fallthru
        _
      %p224 = scmp.le.s32.totalorder 2, %s11
      // Predicated region
      $region33: #{tpu_custom_call.1} parent=5 // pred_check
        %p225 = pneg %p224
      $region34: #{tpu_custom_call.1} parent=5 // pred_check_branch
        %227 = sbr.rel (%p225) target = $region36
      $region35: #{tpu_custom_call.1} parent=5 // pred_region
        %s228 = ssub.s32 %s11, 2
        // Predicated region
        $region37: #{tpu_custom_call.1} parent=35 // pred_check
          %p229 = pneg %p87
        $region38: #{tpu_custom_call.1} parent=35 // pred_check_branch
          %231 = sbr.rel (%p229) target = $region40
        $region39: #{tpu_custom_call.1} parent=35 // pred_region
          %s232 = sand.u32 %s72, 1
          %s233 = scalar_lea.sflag [#allocation3], %s232
          %s234 = sand.u32 %s72, 1
          %s235 = smul.addr %s234, 16
          %s236 = scalar_lea.vmem [#allocation2], %s235
          %238 = dma.done %s233, 256
        $region40: #{tpu_custom_call.1} parent=35 // pred_fallthru
          _
      $region36: #{tpu_custom_call.1} parent=5 // pred_fallthru
        _
    $region6: #{tpu_custom_call.1} parent=1 // loop_footer
      %s15 = sadd.s32 1, %s11
    $region7: #{tpu_custom_call.1} parent=1 // loop_footer_branch
      %10 = sbr.rel target = $region3
    $region8: #{tpu_custom_call.1} parent=1 // loop_exit
      _
    %239 = vsyncpa [#allocation3], 1
    %s240 = scalar_lea.sflag [#allocation3], 1
    %241 = vsyncpa %s240, 1

</llo_original>
